<compile_context>
chip_gen: v5e
topology: v5e:2x2
jax: 0.10.0
libtpu: 0.0.40
codegen_flags: <defaults>
</compile_context>

<pallas_src>
import jax
import jax.numpy as jnp
from jax import lax
from jax.experimental import pallas as pl
from jax.experimental.pallas import tpu as pltpu
import numpy as np


# ----------------------------- Pallas kernel ------------------------------ #
def _dep_gan_kernel(q_ref, k_ref, h_ref, sp_ref, wh_ref, out_ref, elm_ref):
    """One (batch, query-row-tile) grid step.

    q_ref:   (1, TQ, H2)      query rows for this tile
    k_ref:   (1, S,  H2)      keys (full padded sequence, batch-resident)
    h_ref:   (1, S,  H)       hidden states (full padded sequence, batch-resident)
    sp_ref:  (1, TQ, S)       precomputed edge-type score + dep mask + bias
    wh_ref:  (1, H2)          attention weight (elementwise-hidden part)
    out_ref: (1, TQ, H)       attention output rows
    elm_ref: (1, TQ, S, H2)   elmwise_hidden rows (natural 4-D layout)
    """
    q = q_ref[0]          # (TQ, H2)
    k = k_ref[0]          # (S, H2)
    h = h_ref[0]          # (S, H)
    sp = sp_ref[0]        # (TQ, S)
    wh = wh_ref[...]      # (1, H2)

    # elmwise_hidden tile: elm[i, j, d] = q[i, d] * k[j, d]   (pure VPU broadcast)
    elm = q[:, None, :] * k[None, :, :]                        # (TQ, S, H2)
    elm_ref[0] = elm.astype(elm_ref.dtype)

    # score_h[i, j] = sum_d q[i,d] * wh[d] * k[j,d]   (trans-B dot, no k.T copy)
    # HIGHEST precision here is free: these matmuls are tiny next to the elm write.
    qw = q * wh                                                # (TQ, H2)
    score_h = lax.dot_general(qw, k, (((1,), (1,)), ((), ())),
                              preferred_element_type=jnp.float32,
                              precision=lax.Precision.HIGHEST)  # (TQ, S)
    scores = score_h + sp                                       # (TQ, S)

    # Softmax over keys (exact divide — memory-bound kernel, exactness is free).
    m = jnp.max(scores, axis=-1, keepdims=True)
    e = jnp.exp(scores - m)
    probs = e / jnp.sum(e, axis=-1, keepdims=True)

    out = jnp.dot(probs, h, preferred_element_type=jnp.float32,
                  precision=lax.Precision.HIGHEST)              # (TQ, H)
    out_ref[0] = out.astype(out_ref.dtype)


# ------------------------- tiling / VMEM budgeting ------------------------- #
def _round_up(x, m):
    return (x + m - 1) // m * m


def _vmem_capacity_bytes():
    try:
        return int(pltpu.get_tpu_info().vmem_capacity_bytes)
    except Exception:
        return 64 * 1024 * 1024   # conservative fallback (v7x: 64 MiB per TC)


def _estimate_vmem_bytes(tq, S, H, H2, elm_itemsize):
    """Rough per-grid-step VMEM footprint for a query-row tile of size tq."""
    s_pad = _round_up(max(S, 1), tq)
    lane_h2 = _round_up(H2, 128)           # minor-dim lane padding in VMEM
    # Double-buffered per-tile blocks: elm out, out, q, scores_pre.
    db = 2 * (tq * s_pad * lane_h2 * elm_itemsize
              + tq * _round_up(H, 128) * 4
              + tq * lane_h2 * 4
              + tq * _round_up(s_pad, 128) * 4)
    # Single-buffered, batch-resident blocks: k, hidden, w_h.
    sb = s_pad * lane_h2 * 4 + s_pad * _round_up(H, 128) * 4 + lane_h2 * 4
    # In-kernel temporaries: f32 elm before cast, softmax temps, score_h, out.
    tmp = (tq * s_pad * lane_h2 * 4
           + 6 * tq * _round_up(s_pad, 128) * 4
           + tq * _round_up(H, 128) * 4)
    return db + sb + tmp


def _pick_tq(S, H, H2, elm_itemsize, vmem_bytes):
    """Largest VMEM-fitting query-row tile (multiple of 8, capped near S)."""
    budget = int(0.4 * vmem_bytes)
    s8 = _round_up(max(S, 1), 8)
    for tq in (256, 128, 64, 32, 16, 8):
        if tq > s8:
            continue
        if _estimate_vmem_bytes(tq, S, H, H2, elm_itemsize) <= budget:
            return tq
    return 8   # best effort; smallest tile


# ------------------------------ kernel wrapper ------------------------------ #
def dep_gan_pallas(q, k, hidden, scores_pre, w_h, *, elm_dtype=jnp.float32):
    """q,k: (B,S,H2); hidden: (B,S,H); scores_pre: (B,S,S); w_h: (H2,)."""
    B, S, H = hidden.shape
    H2 = q.shape[-1]
    elm_itemsize = jnp.dtype(elm_dtype).itemsize

    vmem_bytes = _vmem_capacity_bytes()
    TQ = _pick_tq(S, H, H2, elm_itemsize, vmem_bytes)
    S_pad = _round_up(S, TQ)
    if S_pad != S:
        pad = S_pad - S
        q = jnp.pad(q, ((0, 0), (0, pad), (0, 0)))
        k = jnp.pad(k, ((0, 0), (0, pad), (0, 0)))
        hidden = jnp.pad(hidden, ((0, 0), (0, pad), (0, 0)))
        # Padded key columns / query rows are masked out of the softmax.
        scores_pre = jnp.pad(scores_pre, ((0, 0), (0, pad), (0, pad)),
                             constant_values=-1e30)
    nq = S_pad // TQ

    w_h2 = w_h.reshape(1, H2).astype(jnp.float32)

    # b leading + "parallel": v7x megacore splits on batch when B >= 2, keeping
    # the per-batch k/hidden residency pattern on each core.
    grid = (B, nq)
    in_specs = [
        pl.BlockSpec((1, TQ, H2), lambda b, i: (b, i, 0)),               # q tile
        pl.BlockSpec((1, S_pad, H2), lambda b, i: (b, 0, 0),
                     pipeline_mode=pl.Buffered(1)),                      # k (batch-resident)
        pl.BlockSpec((1, S_pad, H), lambda b, i: (b, 0, 0),
                     pipeline_mode=pl.Buffered(1)),                      # hidden
        pl.BlockSpec((1, TQ, S_pad), lambda b, i: (b, i, 0)),            # scores_pre tile
        pl.BlockSpec((1, H2), lambda b, i: (0, 0),
                     pipeline_mode=pl.Buffered(1)),                      # w_h
    ]
    out_specs = (
        pl.BlockSpec((1, TQ, H), lambda b, i: (b, i, 0)),                # attention out
        pl.BlockSpec((1, TQ, S_pad, H2), lambda b, i: (b, i, 0, 0)),     # elm (natural 4-D)
    )
    out_shapes = (
        jax.ShapeDtypeStruct((B, S_pad, H), jnp.float32),
        jax.ShapeDtypeStruct((B, S_pad, S_pad, H2), elm_dtype),
    )

    # Advisory cost: dominated by the elm HBM write.
    flops = int(B * S_pad * S_pad * (3 * H2 + 2 * H + 5))
    bytes_accessed = int(B * S_pad * S_pad * (H2 * elm_itemsize + 4)
                         + B * S_pad * (2 * H2 + 2 * H) * 4)
    cost = pl.CostEstimate(flops=flops,
                           transcendentals=int(B * S_pad * S_pad),
                           bytes_accessed=bytes_accessed)

    out, elm = pl.pallas_call(
        _dep_gan_kernel,
        out_shape=out_shapes,
        grid=grid,
        in_specs=in_specs,
        out_specs=out_specs,
        compiler_params=pltpu.CompilerParams(
            dimension_semantics=("parallel", "parallel"),
            vmem_limit_bytes=min(int(0.75 * vmem_bytes), 112 * 1024 * 1024)),
        cost_estimate=cost,
    )(q, k, hidden, scores_pre, w_h2)

    if S_pad != S:
        out = out[:, :S, :]
        elm = elm[:, :S, :S, :]
    return out, elm


# --------------------------- JAX-side glue / model ------------------------- #
class DependencyGANParams:
    """Deterministically-initialized parameters mirroring the PyTorch module."""

    def __init__(self, hidden_size, embedding_size, key):
        H, H2, E = hidden_size, hidden_size // 2, embedding_size
        ks = jax.random.split(key, 6)
        self.etype_embedding = jax.random.normal(ks[0], (76, E), jnp.float32) * 0.02
        self.etype_embedding = self.etype_embedding.at[0].set(0.0)   # padding_idx=0
        self.wq = jax.random.normal(ks[1], (H2, H), jnp.float32) * 0.02
        self.bq = jax.random.normal(ks[2], (H2,), jnp.float32) * 0.02
        self.wk = jax.random.normal(ks[3], (H2, H), jnp.float32) * 0.02
        self.bk = jax.random.normal(ks[4], (H2,), jnp.float32) * 0.02
        self.wa = jax.random.normal(ks[5], (1, H2 + E), jnp.float32) * 0.02
        self.ba = jnp.zeros((1,), jnp.float32)


def create_graph(seq_len, dep_graph_coo, dep_graph_etype):
    """dep_graph_coo: (B, 2, nnz) int32; dep_graph_etype: (B, nnz) int32."""
    def one(coo, et):
        g = jnp.zeros((seq_len, seq_len), jnp.int32)
        return g.at[coo[0], coo[1]].set(et)

    dep_graphs = jax.vmap(one)(dep_graph_coo, dep_graph_etype)       # (B, S, S)
    dep_masks = (1.0 - (dep_graphs > 0).astype(jnp.float32)) * -10000.0
    return dep_graphs, dep_masks


def dependency_gan_forward(params, hidden, dep_graph_coo, dep_graph_etype,
                           *, elm_dtype=jnp.float32):
    B, S, H = hidden.shape
    H2 = params.wq.shape[0]
    dep_graphs, dep_masks = create_graph(S, dep_graph_coo, dep_graph_etype)

    w_h = params.wa[0, :H2]
    w_e = params.wa[0, H2:]

    # Algebraic rewrite: the edge-feature attention contribution collapses to a
    # per-edge-type scalar; gather it instead of DMA-ing (B,S,S,E) into VMEM.
    etype_score = jnp.einsum('te,e->t', params.etype_embedding, w_e,
                             precision='highest')             # (76,)
    score_e = etype_score[dep_graphs]                          # (B, S, S)
    scores_pre = score_e + dep_masks + params.ba[0]            # fused mask + bias

    q = hidden @ params.wq.T + params.bq                       # (B, S, H2)
    k = hidden @ params.wk.T + params.bk                       # (B, S, H2)

    output, elmwise_hidden = dep_gan_pallas(q, k, hidden, scores_pre, w_h,
                                            elm_dtype=elm_dtype)
    return output, elmwise_hidden, dep_graphs, dep_masks


def dependency_gan_reference(params, hidden, dep_graph_coo, dep_graph_etype):
    """Pure-JAX reference matching the PyTorch forward (dropout = identity)."""
    B, S, H = hidden.shape
    dep_graphs, dep_masks = create_graph(S, dep_graph_coo, dep_graph_etype)
    edge_feature = params.etype_embedding[dep_graphs]
    q = hidden @ params.wq.T + params.bq
    k = hidden @ params.wk.T + params.bk
    elm = q[:, :, None, :] * k[:, None, :, :]                    # (B,S,S,H2)
    cat = jnp.concatenate([elm, edge_feature], axis=-1)
    scores = jnp.einsum('bijc,oc->bijo', cat, params.wa,
                        precision='highest')[..., 0] + params.ba[0]
    scores = scores + dep_masks
    probs = jax.nn.softmax(scores, axis=-1)
    output = jnp.einsum('bij,bjh->bih', probs, hidden, precision='highest')
    return output, elm, dep_graphs, dep_masks


# ---------------------------------- main ----------------------------------- #
if __name__ == "__main__":
    B, S, H, E = 2, 8, 32, 16      # batch, seq, hidden_size, addtional_feature_size
    NNZ = 6

    key = jax.random.PRNGKey(0)
    k_param, k_hidden = jax.random.split(key)
    params = DependencyGANParams(H, E, k_param)

    hidden = jax.random.normal(k_hidden, (B, S, H), jnp.float32)

    # Deterministic sparse dependency graphs (COO indices + edge-type values).
    rows = np.stack([np.arange(NNZ) % S for _ in range(B)])                 # (B, nnz)
    cols = np.stack([(np.arange(NNZ) * 2 + i + 1) % S for i in range(B)])   # (B, nnz)
    dep_graph_coo = jnp.asarray(np.stack([rows, cols], axis=1), jnp.int32)  # (B, 2, nnz)
    dep_graph_etype = jnp.asarray(
        np.stack([(np.arange(NNZ) + 1 + i) % 75 + 1 for i in range(B)]), jnp.int32)

    out, elm, graphs, masks = dependency_gan_forward(
        params, hidden, dep_graph_coo, dep_graph_etype)
    jax.block_until_ready((out, elm, graphs, masks))

    ref_out, ref_elm, ref_graphs, ref_masks = dependency_gan_reference(
        params, hidden, dep_graph_coo, dep_graph_etype)

    assert jnp.allclose(out, ref_out, atol=1e-3, rtol=1e-3), "output mismatch"
    assert jnp.allclose(elm, ref_elm, atol=1e-5, rtol=1e-5), "elm mismatch"
    assert jnp.array_equal(graphs, ref_graphs)
    assert jnp.allclose(masks, ref_masks)

    # Production configuration: bf16 elm halves the dominant HBM write stream.
    out_bf, elm_bf, _, _ = dependency_gan_forward(
        params, hidden, dep_graph_coo, dep_graph_etype, elm_dtype=jnp.bfloat16)
    jax.block_until_ready((out_bf, elm_bf))
    assert jnp.allclose(out_bf, ref_out, atol=1e-3, rtol=1e-3)
    assert jnp.allclose(elm_bf.astype(jnp.float32), ref_elm, atol=1e-3, rtol=2e-2)

    print("KERNEL_OK")
</pallas_src>

<mosaic_0001>
module attributes {stable_mosaic.version = 11 : i64} {
  func.func @_dep_gan_kernel(%arg0: i32, %arg1: i32, %arg2: memref<1x8x16xf32, #tpu.memory_space<vmem>>, %arg3: memref<1x8x16xf32, #tpu.memory_space<vmem>>, %arg4: memref<1x8x32xf32, #tpu.memory_space<vmem>>, %arg5: memref<1x8x8xf32, #tpu.memory_space<vmem>>, %arg6: memref<1x16xf32, #tpu.memory_space<vmem>>, %arg7: memref<1x8x32xf32, #tpu.memory_space<vmem>>, %arg8: memref<1x8x8x16xf32, #tpu.memory_space<vmem>>) attributes {dimension_semantics = [#tpu.dimension_semantics<parallel>, #tpu.dimension_semantics<parallel>], iteration_bounds = array<i64: 2, 1>, scalar_prefetch = 0 : i64, scratch_operands = 0 : i64, tpu.core_type = #tpu.core_type<tc>, window_params = [{transform_indices = @transform_0, window_bounds = array<i64: 1, 8, 16>}, {pipeline_mode = #tpu.pipeline_mode<synchronous>, transform_indices = @transform_1, window_bounds = array<i64: 1, 8, 16>}, {pipeline_mode = #tpu.pipeline_mode<synchronous>, transform_indices = @transform_2, window_bounds = array<i64: 1, 8, 32>}, {transform_indices = @transform_3, window_bounds = array<i64: 1, 8, 8>}, {pipeline_mode = #tpu.pipeline_mode<synchronous>, transform_indices = @transform_4, window_bounds = array<i64: 1, 16>}, {transform_indices = @transform_5, window_bounds = array<i64: 1, 8, 32>}, {transform_indices = @transform_6, window_bounds = array<i64: 1, 8, 8, 16>}]} {
    %c0 = arith.constant 0 : index
    %c0_0 = arith.constant 0 : index
    %c0_1 = arith.constant 0 : index
    %0 = vector.load %arg2[%c0, %c0_0, %c0_1] : memref<1x8x16xf32, #tpu.memory_space<vmem>>, vector<1x8x16xf32>
    %1 = vector.shape_cast %0 : vector<1x8x16xf32> to vector<8x16xf32>
    %c0_2 = arith.constant 0 : index
    %c0_3 = arith.constant 0 : index
    %c0_4 = arith.constant 0 : index
    %2 = vector.load %arg3[%c0_2, %c0_3, %c0_4] : memref<1x8x16xf32, #tpu.memory_space<vmem>>, vector<1x8x16xf32>
    %3 = vector.shape_cast %2 : vector<1x8x16xf32> to vector<8x16xf32>
    %c0_5 = arith.constant 0 : index
    %c0_6 = arith.constant 0 : index
    %c0_7 = arith.constant 0 : index
    %4 = vector.load %arg4[%c0_5, %c0_6, %c0_7] : memref<1x8x32xf32, #tpu.memory_space<vmem>>, vector<1x8x32xf32>
    %5 = vector.shape_cast %4 : vector<1x8x32xf32> to vector<8x32xf32>
    %c0_8 = arith.constant 0 : index
    %c0_9 = arith.constant 0 : index
    %c0_10 = arith.constant 0 : index
    %6 = vector.load %arg5[%c0_8, %c0_9, %c0_10] : memref<1x8x8xf32, #tpu.memory_space<vmem>>, vector<1x8x8xf32>
    %7 = vector.shape_cast %6 : vector<1x8x8xf32> to vector<8x8xf32>
    %c0_11 = arith.constant 0 : index
    %c0_12 = arith.constant 0 : index
    %8 = vector.load %arg6[%c0_11, %c0_12] : memref<1x16xf32, #tpu.memory_space<vmem>>, vector<1x16xf32>
    %9 = vector.shape_cast %1 : vector<8x16xf32> to vector<8x1x16xf32>
    %10 = vector.shape_cast %3 : vector<8x16xf32> to vector<1x8x16xf32>
    %11 = vector.broadcast %9 : vector<8x1x16xf32> to vector<8x8x16xf32>
    %12 = vector.broadcast %10 : vector<1x8x16xf32> to vector<8x8x16xf32>
    %13 = arith.mulf %11, %12 : vector<8x8x16xf32>
    %c0_13 = arith.constant 0 : index
    %c0_14 = arith.constant 0 : index
    %c0_15 = arith.constant 0 : index
    %c0_16 = arith.constant 0 : index
    %14 = vector.load %arg8[%c0_13, %c0_14, %c0_15, %c0_16] : memref<1x8x8x16xf32, #tpu.memory_space<vmem>>, vector<1x8x8x16xf32>
    %15 = vector.shape_cast %14 : vector<1x8x8x16xf32> to vector<8x8x16xf32>
    %16 = vector.shape_cast %13 : vector<8x8x16xf32> to vector<1x8x8x16xf32>
    tpu.vector_store %arg8[%c0_13, %c0_14, %c0_15, %c0_16], %16 {strides = array<i32>} : memref<1x8x8x16xf32, #tpu.memory_space<vmem>>, vector<1x8x8x16xf32>,
    %17 = vector.broadcast %8 : vector<1x16xf32> to vector<8x16xf32>
    %18 = arith.mulf %1, %17 : vector<8x16xf32>
    %cst = arith.constant dense<0.000000e+00> : vector<8x8xf32>
    %19 = tpu.matmul %18, %3, %cst {dimension_numbers = #tpu.dot_dimension_numbers<[1], [1], [0], [0], [0, 0, 1, 0], [], []>, precision = #tpu.contract_precision<fp32>} : vector<8x16xf32>, vector<8x16xf32>, vector<8x8xf32> -> vector<8x8xf32>
    %20 = arith.addf %19, %7 : vector<8x8xf32>
    %cst_17 = arith.constant dense<0xFF800000> : vector<8xf32>
    %21 = vector.multi_reduction <maximumf>, %20, %cst_17 [1] : vector<8x8xf32> to vector<8xf32>
    %22 = vector.shape_cast %21 : vector<8xf32> to vector<8x1xf32>
    %23 = vector.broadcast %22 : vector<8x1xf32> to vector<8x8xf32>
    %24 = arith.subf %20, %23 : vector<8x8xf32>
    %25 = math.exp %24 : vector<8x8xf32>
    %cst_18 = arith.constant dense<0.000000e+00> : vector<8xf32>
    %26 = vector.multi_reduction <add>, %25, %cst_18 [1] : vector<8x8xf32> to vector<8xf32>
    %27 = vector.shape_cast %26 : vector<8xf32> to vector<8x1xf32>
    %28 = vector.broadcast %27 : vector<8x1xf32> to vector<8x8xf32>
    %29 = arith.divf %25, %28 : vector<8x8xf32>
    %cst_19 = arith.constant dense<0.000000e+00> : vector<8x32xf32>
    %30 = tpu.matmul %29, %5, %cst_19 {dimension_numbers = #tpu.dot_dimension_numbers<[1], [0], [0], [1], [0, 0, 1, 1], [], []>, precision = #tpu.contract_precision<fp32>} : vector<8x8xf32>, vector<8x32xf32>, vector<8x32xf32> -> vector<8x32xf32>
    %c0_20 = arith.constant 0 : index
    %c0_21 = arith.constant 0 : index
    %c0_22 = arith.constant 0 : index
    %31 = vector.load %arg7[%c0_20, %c0_21, %c0_22] : memref<1x8x32xf32, #tpu.memory_space<vmem>>, vector<1x8x32xf32>
    %32 = vector.shape_cast %31 : vector<1x8x32xf32> to vector<8x32xf32>
    %33 = vector.shape_cast %30 : vector<8x32xf32> to vector<1x8x32xf32>
    tpu.vector_store %arg7[%c0_20, %c0_21, %c0_22], %33 {strides = array<i32>} : memref<1x8x32xf32, #tpu.memory_space<vmem>>, vector<1x8x32xf32>,
    return
  }
  func.func @transform_0(%arg0: i32, %arg1: i32) -> (i32, i32, i32) {
    %c0_i32 = arith.constant 0 : i32
    %c0_i32_0 = arith.constant 0 : i32
    return %arg0, %arg1, %c0_i32 : i32, i32, i32
  }
  func.func @transform_1(%arg0: i32, %arg1: i32) -> (i32, i32, i32) {
    %c0_i32 = arith.constant 0 : i32
    %c0_i32_0 = arith.constant 0 : i32
    %c0_i32_1 = arith.constant 0 : i32
    return %arg0, %c0_i32, %c0_i32_0 : i32, i32, i32
  }
  func.func @transform_2(%arg0: i32, %arg1: i32) -> (i32, i32, i32) {
    %c0_i32 = arith.constant 0 : i32
    %c0_i32_0 = arith.constant 0 : i32
    %c0_i32_1 = arith.constant 0 : i32
    return %arg0, %c0_i32, %c0_i32_0 : i32, i32, i32
  }
  func.func @transform_3(%arg0: i32, %arg1: i32) -> (i32, i32, i32) {
    %c0_i32 = arith.constant 0 : i32
    %c0_i32_0 = arith.constant 0 : i32
    return %arg0, %arg1, %c0_i32 : i32, i32, i32
  }
  func.func @transform_4(%arg0: i32, %arg1: i32) -> (i32, i32) {
    %c0_i32 = arith.constant 0 : i32
    %c0_i32_0 = arith.constant 0 : i32
    %c0_i32_1 = arith.constant 0 : i32
    return %c0_i32, %c0_i32_0 : i32, i32
  }
  func.func @transform_5(%arg0: i32, %arg1: i32) -> (i32, i32, i32) {
    %c0_i32 = arith.constant 0 : i32
    %c0_i32_0 = arith.constant 0 : i32
    return %arg0, %arg1, %c0_i32 : i32, i32, i32
  }
  func.func @transform_6(%arg0: i32, %arg1: i32) -> (i32, i32, i32, i32) {
    %c0_i32 = arith.constant 0 : i32
    %c0_i32_0 = arith.constant 0 : i32
    %c0_i32_1 = arith.constant 0 : i32
    return %arg0, %arg1, %c0_i32, %c0_i32_0 : i32, i32, i32, i32
  }
}

</mosaic_0001>

<llo_original>
// kernel: tpu_custom_call.1
$region0: #{tpu_custom_call.1}
  #allocation0 [shape = 'u32[]', space=smem, size = 0x4, offset = 0x4, fixed_abs, tag = 'smem constant byte address 0x4 - core index']
  #allocation1 [shape = 'u32[72,128]{1,0:T(1,128)}', space=vmem, size = 0x9000, scoped, tag = 'internal scratch']
  %s0 = inlined_call_operand.hbm [shape: f32[2,8,16], index: 0, kind: input, shape index: {}]
  %s1 = inlined_call_operand.hbm [shape: f32[2,8,16], index: 1, kind: input, shape index: {}]
  %s2 = inlined_call_operand.hbm [shape: f32[2,8,32], index: 2, kind: input, shape index: {}]
  %s3 = inlined_call_operand.hbm [shape: f32[2,8,8], index: 3, kind: input, shape index: {}]
  %s4 = inlined_call_operand.vmem [shape: f32[1,16], index: 4, kind: input, shape index: {}]
  %s5 = inlined_call_operand.hbm [shape: f32[2,8,32], index: 5, kind: output, shape index: {0}]
  %s6 = inlined_call_operand.hbm [shape: f32[2,8,8,16], index: 6, kind: output, shape index: {1}]
  %7 = xla_tuple %s5, %s6
  %s8 = sld [smem:[#allocation0]]
  $region77: #{tpu_custom_call.1} parent=0
    _
  %s10 = ssub.s32 1, %s8
  %s11 = scalar_select 0, %s10, %s8
  $region1: #{tpu_custom_call.1} parent=0
    #allocation2 [shape = 'u8[8192]{0}', space=vmem, size = 0x2000, scoped, tag = 'input window, operand 0']
    #allocation3 [shape = 's32[2]{0}', space=sflag, size = 0x8, scoped, tag = 'scoped memory for tpu_custom_call.1']
    #allocation4 [shape = 's32[2]{0}', space=sflag, size = 0x8, scoped, tag = 'scoped memory for tpu_custom_call.1']
    #allocation5 [shape = 'u8[4096]{0}', space=vmem, size = 0x1000, scoped, tag = 'input window, operand 1, single buffered']
    #allocation6 [shape = 's32[1]{0}', space=sflag, size = 0x4, scoped, tag = 'scoped memory for tpu_custom_call.1']
    #allocation7 [shape = 'u8[4096]{0}', space=vmem, size = 0x1000, scoped, tag = 'input window, operand 2, single buffered']
    #allocation8 [shape = 'u8[8192]{0}', space=vmem, size = 0x2000, scoped, tag = 'input window, operand 3']
    #allocation9 [shape = 's32[2]{0}', space=sflag, size = 0x8, scoped, tag = 'scoped memory for tpu_custom_call.1']
    #allocation10 [shape = 'u8[8192]{0}', space=vmem, size = 0x2000, scoped, tag = 'output window, operand 0']
    #allocation11 [shape = 'u8[65536]{0}', space=vmem, size = 0x10000, scoped, tag = 'output window, operand 1']
    #allocation12 [shape = 's32[2]{0}', space=sflag, size = 0x8, scoped, tag = 'scoped memory for tpu_custom_call.1']
    %12 = vsyncpa [#allocation3], 0
    %s13 = scalar_lea.sflag [#allocation3], 1
    %14 = vsyncpa %s13, 0
    %15 = vsyncpa [#allocation6], 0
    %16 = vsyncpa [#allocation9], 0
    %s17 = scalar_lea.sflag [#allocation9], 1
    %18 = vsyncpa %s17, 0
    %19 = vsyncpa [#allocation4], 0
    %s20 = scalar_lea.sflag [#allocation4], 1
    %21 = vsyncpa %s20, 0
    %22 = vsyncpa [#allocation12], 0
    %s23 = scalar_lea.sflag [#allocation12], 1
    %24 = vsyncpa %s23, 0
    loop: start=0, step=1, limit=4
    $region2: #{tpu_custom_call.1} parent=1 // loop_pre_header
      _
    $region3: #{tpu_custom_call.1} parent=1 // loop_header
      %s26 = sphi 0, %s30
      %p27 = scmp.ge.s32.totalorder %s26, 4
      %s33 = sphi 0, %s45
      %s34 = sphi 0, %s41
      %s35 = sphi 0, %s33
      %s36 = sphi 0, %s34
      %s37 = sphi 0, %s35
      %s38 = sphi 0, %s36
      %s50 = sphi 0, %s52
      %s53 = sphi 0, %s50
      %s54 = sphi 0, %s53
      %s70 = sphi 0, %s54
      %s76 = sphi 0, %s78
      %s79 = sphi 0, %s76
      %s80 = sphi 0, %s79
      %s96 = sphi 0, %s80
      %s102 = sphi 0, %s104
      %s105 = sphi 0, %s102
      %s106 = sphi 0, %s105
      %s122 = sphi 0, %s106
      %s130 = sphi 0, %s132
      %s133 = sphi 0, %s130
      %s134 = sphi 0, %s133
      %s150 = sphi 0, %s134
      %s154 = sphi 0, %s154
      %s156 = sphi 0, %s154
      %s157 = sphi 0, %s156
      %s171 = sphi 0, %s157
      %s179 = sphi 0, %s181
      %s182 = sphi 0, %s179
      %s183 = sphi 0, %s182
      %s199 = sphi 0, %s183
      %s207 = sphi 0, %s209
      %s210 = sphi 0, %s207
      %s211 = sphi 0, %s210
      %s227 = sphi 0, %s211
    $region4: #{tpu_custom_call.1} parent=1 // loop_header_branch
      %29 = sbr.rel (%p27) target = $region8
    $region5: #{tpu_custom_call.1} parent=1 // loop_body
      %s31 = ssub.s32 %s26, 1
      %s32 = ssub.s32 %s26, 2
      %s39 = sadd.s32 1, %s34
      %p40 = scmp.ge.s32.totalorder %s39, 1
      %s41 = scalar_select %p40, 0, %s39
      %s42 = sadd.s32 1, %s33
      %s43 = scalar_select %p40, %s42, %s33
      %p44 = scmp.ge.s32.totalorder %s43, 2
      %s45 = scalar_select %p44, 0, %s43
      %s46 = ssub.s32 %s33, %s45
      %s47 = ssub.s32 %s34, %s41
      %s48 = sor.u32 %s46, %s47
      %p49 = scmp.eq.s32.totalorder %s48, 0
      %s51 = sadd.s32 %s50, 1
      %s52 = scalar_select %p49, %s50, %s51
      %p55 = pneg %p49
      %p56 = scmp.eq.s32.totalorder %s26, 1
      %p57 = por %p55, %p56
      %p58 = scmp.ne.s32.totalorder %s50, %s53
      %p59 = scmp.eq.s32.totalorder %s26, 0
      %p60 = por %p58, %p59
      %p61 = scmp.ne.s32.totalorder %s50, %s53
      %p62 = scmp.eq.s32.totalorder %s31, 1
      %p63 = por %p61, %p62
      %p64 = scmp.ne.s32.totalorder %s53, %s54
      %p65 = scmp.eq.s32.totalorder %s31, 0
      %p66 = por %p64, %p65
      %p67 = scmp.ne.s32.totalorder %s53, %s54
      %p68 = scmp.eq.s32.totalorder %s32, 1
      %p69 = por %p67, %p68
      %p71 = scmp.ne.s32.totalorder %s54, %s70
      %p72 = scmp.eq.s32.totalorder %s32, 0
      %p73 = por %p71, %p72
      %s74 = ssub.s32 %s33, %s45
      %p75 = scmp.eq.s32.totalorder %s74, 0
      %s77 = sadd.s32 %s76, 1
      %s78 = scalar_select %p75, %s76, %s77
      %p81 = pneg %p75
      %p82 = scmp.eq.s32.totalorder %s26, 1
      %p83 = por %p81, %p82
      %p84 = scmp.ne.s32.totalorder %s76, %s79
      %p85 = scmp.eq.s32.totalorder %s26, 0
      %p86 = por %p84, %p85
      %p87 = scmp.ne.s32.totalorder %s76, %s79
      %p88 = scmp.eq.s32.totalorder %s31, 1
      %p89 = por %p87, %p88
      %p90 = scmp.ne.s32.totalorder %s79, %s80
      %p91 = scmp.eq.s32.totalorder %s31, 0
      %p92 = por %p90, %p91
      %p93 = scmp.ne.s32.totalorder %s79, %s80
      %p94 = scmp.eq.s32.totalorder %s32, 1
      %p95 = por %p93, %p94
      %p97 = scmp.ne.s32.totalorder %s80, %s96
      %p98 = scmp.eq.s32.totalorder %s32, 0
      %p99 = por %p97, %p98
      %s100 = ssub.s32 %s33, %s45
      %p101 = scmp.eq.s32.totalorder %s100, 0
      %s103 = sadd.s32 %s102, 1
      %s104 = scalar_select %p101, %s102, %s103
      %p107 = pneg %p101
      %p108 = scmp.eq.s32.totalorder %s26, 1
      %p109 = por %p107, %p108
      %p110 = scmp.ne.s32.totalorder %s102, %s105
      %p111 = scmp.eq.s32.totalorder %s26, 0
      %p112 = por %p110, %p111
      %p113 = scmp.ne.s32.totalorder %s102, %s105
      %p114 = scmp.eq.s32.totalorder %s31, 1
      %p115 = por %p113, %p114
      %p116 = scmp.ne.s32.totalorder %s105, %s106
      %p117 = scmp.eq.s32.totalorder %s31, 0
      %p118 = por %p116, %p117
      %p119 = scmp.ne.s32.totalorder %s105, %s106
      %p120 = scmp.eq.s32.totalorder %s32, 1
      %p121 = por %p119, %p120
      %p123 = scmp.ne.s32.totalorder %s106, %s122
      %p124 = scmp.eq.s32.totalorder %s32, 0
      %p125 = por %p123, %p124
      %s126 = ssub.s32 %s33, %s45
      %s127 = ssub.s32 %s34, %s41
      %s128 = sor.u32 %s126, %s127
      %p129 = scmp.eq.s32.totalorder %s128, 0
      %s131 = sadd.s32 %s130, 1
      %s132 = scalar_select %p129, %s130, %s131
      %p135 = pneg %p129
      %p136 = scmp.eq.s32.totalorder %s26, 1
      %p137 = por %p135, %p136
      %p138 = scmp.ne.s32.totalorder %s130, %s133
      %p139 = scmp.eq.s32.totalorder %s26, 0
      %p140 = por %p138, %p139
      %p141 = scmp.ne.s32.totalorder %s130, %s133
      %p142 = scmp.eq.s32.totalorder %s31, 1
      %p143 = por %p141, %p142
      %p144 = scmp.ne.s32.totalorder %s133, %s134
      %p145 = scmp.eq.s32.totalorder %s31, 0
      %p146 = por %p144, %p145
      %p147 = scmp.ne.s32.totalorder %s133, %s134
      %p148 = scmp.eq.s32.totalorder %s32, 1
      %p149 = por %p147, %p148
      %p151 = scmp.ne.s32.totalorder %s134, %s150
      %p152 = scmp.eq.s32.totalorder %s32, 0
      %p153 = por %p151, %p152
      %s155 = sadd.s32 %s154, 1
      %p158 = scmp.eq.s32.totalorder %s26, 1
      %p159 = scmp.ne.s32.totalorder %s154, %s156
      %p160 = scmp.eq.s32.totalorder %s26, 0
      %p161 = por %p159, %p160
      %p162 = scmp.ne.s32.totalorder %s154, %s156
      %p163 = scmp.eq.s32.totalorder %s31, 1
      %p164 = por %p162, %p163
      %p165 = scmp.ne.s32.totalorder %s156, %s157
      %p166 = scmp.eq.s32.totalorder %s31, 0
      %p167 = por %p165, %p166
      %p168 = scmp.ne.s32.totalorder %s156, %s157
      %p169 = scmp.eq.s32.totalorder %s32, 1
      %p170 = por %p168, %p169
      %p172 = scmp.ne.s32.totalorder %s157, %s171
      %p173 = scmp.eq.s32.totalorder %s32, 0
      %p174 = por %p172, %p173
      %s175 = ssub.s32 %s33, %s45
      %s176 = ssub.s32 %s34, %s41
      %s177 = sor.u32 %s175, %s176
      %p178 = scmp.eq.s32.totalorder %s177, 0
      %s180 = sadd.s32 %s179, 1
      %s181 = scalar_select %p178, %s179, %s180
      %p184 = pneg %p178
      %p185 = scmp.eq.s32.totalorder %s26, 1
      %p186 = por %p184, %p185
      %p187 = scmp.ne.s32.totalorder %s179, %s182
      %p188 = scmp.eq.s32.totalorder %s26, 0
      %p189 = por %p187, %p188
      %p190 = scmp.ne.s32.totalorder %s179, %s182
      %p191 = scmp.eq.s32.totalorder %s31, 1
      %p192 = por %p190, %p191
      %p193 = scmp.ne.s32.totalorder %s182, %s183
      %p194 = scmp.eq.s32.totalorder %s31, 0
      %p195 = por %p193, %p194
      %p196 = scmp.ne.s32.totalorder %s182, %s183
      %p197 = scmp.eq.s32.totalorder %s32, 1
      %p198 = por %p196, %p197
      %p200 = scmp.ne.s32.totalorder %s183, %s199
      %p201 = scmp.eq.s32.totalorder %s32, 0
      %p202 = por %p200, %p201
      %s203 = ssub.s32 %s33, %s45
      %s204 = ssub.s32 %s34, %s41
      %s205 = sor.u32 %s203, %s204
      %p206 = scmp.eq.s32.totalorder %s205, 0
      %s208 = sadd.s32 %s207, 1
      %s209 = scalar_select %p206, %s207, %s208
      %p212 = pneg %p206
      %p213 = scmp.eq.s32.totalorder %s26, 1
      %p214 = por %p212, %p213
      %p215 = scmp.ne.s32.totalorder %s207, %s210
      %p216 = scmp.eq.s32.totalorder %s26, 0
      %p217 = por %p215, %p216
      %p218 = scmp.ne.s32.totalorder %s207, %s210
      %p219 = scmp.eq.s32.totalorder %s31, 1
      %p220 = por %p218, %p219
      %p221 = scmp.ne.s32.totalorder %s210, %s211
      %p222 = scmp.eq.s32.totalorder %s31, 0
      %p223 = por %p221, %p222
      %p224 = scmp.ne.s32.totalorder %s210, %s211
      %p225 = scmp.eq.s32.totalorder %s32, 1
      %p226 = por %p224, %p225
      %p228 = scmp.ne.s32.totalorder %s211, %s227
      %p229 = scmp.eq.s32.totalorder %s32, 0
      %p230 = por %p228, %p229
      %p231 = scmp.le.s32.totalorder 1, %s26
      %p232 = scmp.lt.s32.totalorder %s26, 3
      %p233 = pnand %p231, %p232
      %p234 = pneg %p233
      // Predicated region
      $region9: #{tpu_custom_call.1} parent=5 // pred_check
        _
      $region10: #{tpu_custom_call.1} parent=5 // pred_check_branch
        %236 = sbr.rel (%p233) target = $region12
      $region11: #{tpu_custom_call.1} parent=5 // pred_region
        %s237 = ssub.s32 %s26, 1
        // Predicated region
        $region13: #{tpu_custom_call.1} parent=11 // pred_check
          %p238 = pneg %p92
        $region14: #{tpu_custom_call.1} parent=11 // pred_check_branch
          %240 = sbr.rel (%p238) target = $region16
        $region15: #{tpu_custom_call.1} parent=11 // pred_region
          %242 = vsyncadd [#allocation6], 0
          %s243 = smul.addr %s35, 8
          %s244 = scalar_lea.hbm %s1, %s243
          %s246 = sshll.u32 %s244, 4
          %s247 = int_to_ptr.hbm [resolvable:$true] %s246
          %s248 = sshll.u32 [#allocation5], 4
          %s249 = int_to_ptr.vmem [resolvable:$true] %s248
          %251 = dma.hbm_to_vmem [thread:$0]  %s247, 128, %s249, [#allocation6]
        $region16: #{tpu_custom_call.1} parent=11 // pred_fallthru
          _
        // Predicated region
        $region17: #{tpu_custom_call.1} parent=11 // pred_check
          %p252 = pneg %p118
        $region18: #{tpu_custom_call.1} parent=11 // pred_check_branch
          %254 = sbr.rel (%p252) target = $region20
        $region19: #{tpu_custom_call.1} parent=11 // pred_region
          %256 = vsyncadd [#allocation6], 0
          %s257 = smul.addr %s35, 8
          %s258 = scalar_lea.hbm %s2, %s257
          %s260 = sshll.u32 %s258, 4
          %s261 = int_to_ptr.hbm [resolvable:$true] %s260
          %s262 = sshll.u32 [#allocation7], 4
          %s263 = int_to_ptr.vmem [resolvable:$true] %s262
          %265 = dma.hbm_to_vmem [thread:$0]  %s261, 128, %s263, [#allocation6]
        $region20: #{tpu_custom_call.1} parent=11 // pred_fallthru
          _
        // Predicated region
        $region21: #{tpu_custom_call.1} parent=11 // pred_check
          %p266 = pneg %p167
        $region22: #{tpu_custom_call.1} parent=11 // pred_check_branch
          %268 = sbr.rel (%p266) target = $region24
        $region23: #{tpu_custom_call.1} parent=11 // pred_region
          _
        $region24: #{tpu_custom_call.1} parent=11 // pred_fallthru
          _
      $region12: #{tpu_custom_call.1} parent=5 // pred_fallthru
        _
      %p269 = scmp.lt.s32.totalorder %s26, 2
      // Predicated region
      $region25: #{tpu_custom_call.1} parent=5 // pred_check
        %p270 = pneg %p269
      $region26: #{tpu_custom_call.1} parent=5 // pred_check_branch
        %272 = sbr.rel (%p270) target = $region28
      $region27: #{tpu_custom_call.1} parent=5 // pred_region
        // Predicated region
        $region29: #{tpu_custom_call.1} parent=27 // pred_check
          %p273 = pneg %p60
        $region30: #{tpu_custom_call.1} parent=27 // pred_check_branch
          %275 = sbr.rel (%p273) target = $region32
        $region31: #{tpu_custom_call.1} parent=27 // pred_region
          %s276 = sand.u32 %s50, 1
          %s277 = scalar_lea.sflag [#allocation3], %s276
          %s278 = sand.u32 %s50, 1
          %s279 = smul.addr %s278, 8
          %s280 = scalar_lea.vmem [#allocation2], %s279
          %282 = vsyncadd %s277, 0
          %s283 = sadd.s32 %s34, %s33
          %s284 = smul.addr %s283, 8
          %s285 = scalar_lea.hbm %s0, %s284
          %s287 = sshll.u32 %s285, 4
          %s288 = int_to_ptr.hbm [resolvable:$true] %s287
          %s289 = sshll.u32 %s280, 4
          %s290 = int_to_ptr.vmem [resolvable:$true] %s289
          %292 = dma.hbm_to_vmem [thread:$0]  %s288, 128, %s290, %s277
        $region32: #{tpu_custom_call.1} parent=27 // pred_fallthru
          _
        // Predicated region
        $region33: #{tpu_custom_call.1} parent=27 // pred_check
          %p293 = pneg %p140
        $region34: #{tpu_custom_call.1} parent=27 // pred_check_branch
          %295 = sbr.rel (%p293) target = $region36
        $region35: #{tpu_custom_call.1} parent=27 // pred_region
          %s296 = sand.u32 %s130, 1
          %s297 = scalar_lea.sflag [#allocation9], %s296
          %s298 = sand.u32 %s130, 1
          %s299 = smul.addr %s298, 8
          %s300 = scalar_lea.vmem [#allocation8], %s299
          %302 = vsyncadd %s297, 0
          %s303 = sadd.s32 %s34, %s33
          %s304 = smul.addr %s303, 8
          %s305 = scalar_lea.hbm %s3, %s304
          %s307 = sshll.u32 %s305, 4
          %s308 = int_to_ptr.hbm [resolvable:$true] %s307
          %s309 = sshll.u32 %s300, 4
          %s310 = int_to_ptr.vmem [resolvable:$true] %s309
          %312 = dma.hbm_to_vmem [thread:$0]  %s308, 128, %s310, %s297
        $region36: #{tpu_custom_call.1} parent=27 // pred_fallthru
          _
      $region28: #{tpu_custom_call.1} parent=5 // pred_fallthru
        _
      %p313 = scmp.le.s32.totalorder 1, %s26
      %p314 = scmp.lt.s32.totalorder %s26, 3
      %p315 = pnand %p313, %p314
      %p316 = pneg %p315
      // Predicated region
      $region37: #{tpu_custom_call.1} parent=5 // pred_check
        _
      $region38: #{tpu_custom_call.1} parent=5 // pred_check_branch
        %318 = sbr.rel (%p315) target = $region40
      $region39: #{tpu_custom_call.1} parent=5 // pred_region
        %s319 = ssub.s32 %s26, 1
        %s320 = sand.u32 %s53, 1
        %s321 = scalar_lea.sflag [#allocation3], %s320
        %s322 = sand.u32 %s53, 1
        %s323 = smul.addr %s322, 8
        %s324 = scalar_lea.vmem [#allocation2], %s323
        // Predicated region
        $region41: #{tpu_custom_call.1} parent=39 // pred_check
          %p325 = pneg %p66
        $region42: #{tpu_custom_call.1} parent=39 // pred_check_branch
          %327 = sbr.rel (%p325) target = $region44
        $region43: #{tpu_custom_call.1} parent=39 // pred_region
          %329 = dma.done %s321, 128
        $region44: #{tpu_custom_call.1} parent=39 // pred_fallthru
          _
        // Predicated region
        $region45: #{tpu_custom_call.1} parent=39 // pred_check
          %p330 = pneg %p92
        $region46: #{tpu_custom_call.1} parent=39 // pred_check_branch
          %332 = sbr.rel (%p330) target = $region48
        $region47: #{tpu_custom_call.1} parent=39 // pred_region
          %334 = dma.done [#allocation6], 128
        $region48: #{tpu_custom_call.1} parent=39 // pred_fallthru
          _
        // Predicated region
        $region49: #{tpu_custom_call.1} parent=39 // pred_check
          %p335 = pneg %p118
        $region50: #{tpu_custom_call.1} parent=39 // pred_check_branch
          %337 = sbr.rel (%p335) target = $region52
        $region51: #{tpu_custom_call.1} parent=39 // pred_region
          %339 = dma.done [#allocation6], 128
        $region52: #{tpu_custom_call.1} parent=39 // pred_fallthru
          _
        %s340 = sand.u32 %s133, 1
        %s341 = scalar_lea.sflag [#allocation9], %s340
        %s342 = sand.u32 %s133, 1
        %s343 = smul.addr %s342, 8
        %s344 = scalar_lea.vmem [#allocation8], %s343
        // Predicated region
        $region53: #{tpu_custom_call.1} parent=39 // pred_check
          %p345 = pneg %p146
        $region54: #{tpu_custom_call.1} parent=39 // pred_check_branch
          %347 = sbr.rel (%p345) target = $region56
        $region55: #{tpu_custom_call.1} parent=39 // pred_region
          %349 = dma.done %s341, 128
        $region56: #{tpu_custom_call.1} parent=39 // pred_fallthru
          _
        %s350 = sand.u32 %s53, 1
        %s351 = scalar_lea.sflag [#allocation3], %s350
        %s352 = sand.u32 %s53, 1
        %s353 = smul.addr %s352, 8
        %s354 = scalar_lea.vmem [#allocation2], %s353
        %p355 = pneg %p66
        %p356 = pneg %p63
        %p357 = pneg %p92
        %p358 = pneg %p89
        %p359 = pneg %p118
        %p360 = pneg %p115
        %s361 = sand.u32 %s133, 1
        %s362 = scalar_lea.sflag [#allocation9], %s361
        %s363 = sand.u32 %s133, 1
        %s364 = smul.addr %s363, 8
        %s365 = scalar_lea.vmem [#allocation8], %s364
        %p366 = pneg %p146
        %p367 = pneg %p143
        %p368 = pneg %p167
        %p369 = pneg %p164
        %p370 = pneg %p195
        %p371 = pneg %p192
        %s372 = sand.u32 %s182, 1
        %s373 = scalar_lea.sflag [#allocation4], %s372
        %s374 = sand.u32 %s182, 1
        %s375 = smul.addr %s374, 8
        %s376 = scalar_lea.vmem [#allocation10], %s375
        %p377 = pneg %p223
        %p378 = pneg %p220
        %s379 = sand.u32 %s210, 1
        %s380 = scalar_lea.sflag [#allocation12], %s379
        %s381 = sand.u32 %s210, 1
        %s382 = smul.addr %s381, 64
        %s383 = scalar_lea.vmem [#allocation11], %s382
        %s384 = smul.u32 8, %s36
        %v385 = vld [vmem:[%s324] sm:$0xff]
        %v386 = vld [vmem:[#allocation5] sm:$0xff]
        %v387 = vld [vmem:[#allocation7] sm:$0xff]
        %v388 = vld [vmem:[%s344] sm:$0xff]
        %v389 = vld [vmem:[%s4] sm:$0x1]
        %v391 = vrot.slane %v385, 1
        %v392 = vrot.slane %v385, 2
        %v393 = vrot.slane %v385, 3
        %v394 = vrot.slane %v385, 4
        %v395 = vrot.slane %v385, 5
        %v396 = vrot.slane %v385, 6
        %v397 = vrot.slane %v385, 7
        %v398 = vperm.slane %v385, 0
        %v399 = vperm.slane %v391, 0
        %v400 = vperm.slane %v392, 0
        %v401 = vperm.slane %v393, 0
        %v402 = vperm.slane %v394, 0
        %v403 = vperm.slane %v395, 0
        %v404 = vperm.slane %v396, 0
        %v405 = vperm.slane %v397, 0
        %v414 = vmul.f32 %v398, %v386
        %v415 = vmul.f32 %v399, %v386
        %v416 = vmul.f32 %v400, %v386
        %v417 = vmul.f32 %v401, %v386
        %v418 = vmul.f32 %v402, %v386
        %v419 = vmul.f32 %v403, %v386
        %v420 = vmul.f32 %v404, %v386
        %v421 = vmul.f32 %v405, %v386
        %vm422 = vcmask 130048
        %423 = vst.msk [vmem:[%s383] sm:$0xff] %vm422, %v414
        %424 = vst.msk [vmem:[%s383 + $0x8] sm:$0xff] %vm422, %v415
        %425 = vst.msk [vmem:[%s383 + $0x10] sm:$0xff] %vm422, %v416
        %426 = vst.msk [vmem:[%s383 + $0x18] sm:$0xff] %vm422, %v417
        %427 = vst.msk [vmem:[%s383 + $0x20] sm:$0xff] %vm422, %v418
        %428 = vst.msk [vmem:[%s383 + $0x28] sm:$0xff] %vm422, %v419
        %429 = vst.msk [vmem:[%s383 + $0x30] sm:$0xff] %vm422, %v420
        %430 = vst.msk [vmem:[%s383 + $0x38] sm:$0xff] %vm422, %v421
        %v432 = vperm.slane %v389, 0
        %v434 = vmul.f32 %v385, %v432
        %v436 = vsel %vm422, %v434, 0
        %v439 = vsel %vm422, %v386, 0
        %441 = vmatpush.xpose.msra.mxu0 0.0
        %442 = vmatpush.xpose.msra.mxu0 0.0
        %443 = vmatpush.xpose.msra.mxu0 0.0
        %444 = vmatpush.xpose.msra.mxu0 0.0
        %445 = vmatpush.xpose.msra.mxu0 0.0
        %446 = vmatpush.xpose.msra.mxu0 0.0
        %447 = vmatpush.xpose.msra.mxu0 0.0
        %448 = vmatpush.xpose.msra.mxu0 0.0
        %449 = vmatpush.xpose.msra.mxu0 0.0
        %450 = vmatpush.xpose.msra.mxu0 0.0
        %451 = vmatpush.xpose.msra.mxu0 0.0
        %452 = vmatpush.xpose.msra.mxu0 0.0
        %453 = vmatpush.xpose.msra.mxu0 0.0
        %454 = vmatpush.xpose.msra.mxu0 0.0
        %455 = vmatpush.xpose.msra.mxu0 0.0
        %v456 = vand.u32 %v439, 4294901760
        %457 = vmatpush.xpose.msra.mxu0 %v456
        %v458 = vand.u32 %v436, 4294901760
        %v459 = vsub.f32 %v436, %v458
        %v460 = vand.u32 %v459, 4294901760
        %v461 = vsub.f32 %v459, %v460
        %v462 = vand.u32 %v461, 4294901760
        %463 = vmatmul.f32.gmra.mxu0 %v462
        %v464 = vpop.f32.mrf.mxu0
        %v465 = vadd.f32 %v388, %v464
        %466 = vdwg.mxu0
        %467 = vmatpush.xpose.msra.mxu0 0.0
        %468 = vmatpush.xpose.msra.mxu0 0.0
        %469 = vmatpush.xpose.msra.mxu0 0.0
        %470 = vmatpush.xpose.msra.mxu0 0.0
        %471 = vmatpush.xpose.msra.mxu0 0.0
        %472 = vmatpush.xpose.msra.mxu0 0.0
        %473 = vmatpush.xpose.msra.mxu0 0.0
        %474 = vmatpush.xpose.msra.mxu0 0.0
        %475 = vmatpush.xpose.msra.mxu0 0.0
        %476 = vmatpush.xpose.msra.mxu0 0.0
        %477 = vmatpush.xpose.msra.mxu0 0.0
        %478 = vmatpush.xpose.msra.mxu0 0.0
        %479 = vmatpush.xpose.msra.mxu0 0.0
        %480 = vmatpush.xpose.msra.mxu0 0.0
        %481 = vmatpush.xpose.msra.mxu0 0.0
        %v482 = vand.u32 %v439, 4294901760
        %v483 = vsub.f32 %v439, %v482
        %v484 = vand.u32 %v483, 4294901760
        %v485 = vsub.f32 %v483, %v484
        %v486 = vand.u32 %v485, 4294901760
        %487 = vmatpush.xpose.msra.mxu0 %v486
        %v488 = vand.u32 %v436, 4294901760
        %489 = vmatmul.f32.gmra.mxu0 %v488
        %v490 = vpop.f32.mrf.mxu0
        %v491 = vadd.f32 %v465, %v490
        %492 = vdwg.mxu0
        %493 = vmatpush.xpose.msra.mxu0 0.0
        %494 = vmatpush.xpose.msra.mxu0 0.0
        %495 = vmatpush.xpose.msra.mxu0 0.0
        %496 = vmatpush.xpose.msra.mxu0 0.0
        %497 = vmatpush.xpose.msra.mxu0 0.0
        %498 = vmatpush.xpose.msra.mxu0 0.0
        %499 = vmatpush.xpose.msra.mxu0 0.0
        %500 = vmatpush.xpose.msra.mxu0 0.0
        %501 = vmatpush.xpose.msra.mxu0 0.0
        %502 = vmatpush.xpose.msra.mxu0 0.0
        %503 = vmatpush.xpose.msra.mxu0 0.0
        %504 = vmatpush.xpose.msra.mxu0 0.0
        %505 = vmatpush.xpose.msra.mxu0 0.0
        %506 = vmatpush.xpose.msra.mxu0 0.0
        %507 = vmatpush.xpose.msra.mxu0 0.0
        %v508 = vand.u32 %v439, 4294901760
        %v509 = vsub.f32 %v439, %v508
        %510 = vmatpush.xpose.msra.mxu0 %v509
        %v511 = vand.u32 %v436, 4294901760
        %v512 = vsub.f32 %v436, %v511
        %513 = vmatmul.f32.gmra.mxu0 %v512
        %v514 = vpop.f32.mrf.mxu0
        %v515 = vadd.f32 %v491, %v514
        %516 = vdwg.mxu0
        %517 = vmatpush.xpose.msra.mxu0 0.0
        %518 = vmatpush.xpose.msra.mxu0 0.0
        %519 = vmatpush.xpose.msra.mxu0 0.0
        %520 = vmatpush.xpose.msra.mxu0 0.0
        %521 = vmatpush.xpose.msra.mxu0 0.0
        %522 = vmatpush.xpose.msra.mxu0 0.0
        %523 = vmatpush.xpose.msra.mxu0 0.0
        %524 = vmatpush.xpose.msra.mxu0 0.0
        %525 = vmatpush.xpose.msra.mxu0 0.0
        %526 = vmatpush.xpose.msra.mxu0 0.0
        %527 = vmatpush.xpose.msra.mxu0 0.0
        %528 = vmatpush.xpose.msra.mxu0 0.0
        %529 = vmatpush.xpose.msra.mxu0 0.0
        %530 = vmatpush.xpose.msra.mxu0 0.0
        %531 = vmatpush.xpose.msra.mxu0 0.0
        %v532 = vand.u32 %v439, 4294901760
        %533 = vmatpush.xpose.msra.mxu0 %v532
        %v534 = vand.u32 %v436, 4294901760
        %v535 = vsub.f32 %v436, %v534
        %v536 = vand.u32 %v535, 4294901760
        %537 = vmatmul.f32.gmra.mxu0 %v536
        %v538 = vpop.f32.mrf.mxu0
        %v539 = vadd.f32 %v515, %v538
        %540 = vdwg.mxu0
        %541 = vmatpush.xpose.msra.mxu0 0.0
        %542 = vmatpush.xpose.msra.mxu0 0.0
        %543 = vmatpush.xpose.msra.mxu0 0.0
        %544 = vmatpush.xpose.msra.mxu0 0.0
        %545 = vmatpush.xpose.msra.mxu0 0.0
        %546 = vmatpush.xpose.msra.mxu0 0.0
        %547 = vmatpush.xpose.msra.mxu0 0.0
        %548 = vmatpush.xpose.msra.mxu0 0.0
        %549 = vmatpush.xpose.msra.mxu0 0.0
        %550 = vmatpush.xpose.msra.mxu0 0.0
        %551 = vmatpush.xpose.msra.mxu0 0.0
        %552 = vmatpush.xpose.msra.mxu0 0.0
        %553 = vmatpush.xpose.msra.mxu0 0.0
        %554 = vmatpush.xpose.msra.mxu0 0.0
        %555 = vmatpush.xpose.msra.mxu0 0.0
        %v556 = vand.u32 %v439, 4294901760
        %v557 = vsub.f32 %v439, %v556
        %v558 = vand.u32 %v557, 4294901760
        %559 = vmatpush.xpose.msra.mxu0 %v558
        %v560 = vand.u32 %v436, 4294901760
        %561 = vmatmul.f32.gmra.mxu0 %v560
        %v562 = vpop.f32.mrf.mxu0
        %v563 = vadd.f32 %v539, %v562
        %564 = vdwg.mxu0
        %565 = vmatpush.xpose.msra.mxu0 0.0
        %566 = vmatpush.xpose.msra.mxu0 0.0
        %567 = vmatpush.xpose.msra.mxu0 0.0
        %568 = vmatpush.xpose.msra.mxu0 0.0
        %569 = vmatpush.xpose.msra.mxu0 0.0
        %570 = vmatpush.xpose.msra.mxu0 0.0
        %571 = vmatpush.xpose.msra.mxu0 0.0
        %572 = vmatpush.xpose.msra.mxu0 0.0
        %573 = vmatpush.xpose.msra.mxu0 0.0
        %574 = vmatpush.xpose.msra.mxu0 0.0
        %575 = vmatpush.xpose.msra.mxu0 0.0
        %576 = vmatpush.xpose.msra.mxu0 0.0
        %577 = vmatpush.xpose.msra.mxu0 0.0
        %578 = vmatpush.xpose.msra.mxu0 0.0
        %579 = vmatpush.xpose.msra.mxu0 0.0
        %v580 = vand.u32 %v439, 4294901760
        %581 = vmatpush.xpose.msra.mxu0 %v580
        %v582 = vand.u32 %v436, 4294901760
        %583 = vmatmul.f32.gmra.mxu0 %v582
        %v584 = vpop.f32.mrf.mxu0
        %v585 = vadd.f32 %v563, %v584
        %586 = vdwg.mxu0
        %vm587 = vcmask 64512
        %v588 = vsel %vm587, %v585, -inf
        %589 = vmax.xlane.f32.xlu0 %v588
        %v590 = vpop.xlane.xlu0 %589
        %v591 = vsub.f32 %v585, %v590
        %v592 = vmul.f32 %v591, 1.442695
        %v593 = vpow.pop %v592
        %v594 = vsel %vm587, %v593, 0.0
        %595 = vadd.xlane.f32.xlu0 %v594
        %v596 = vpop.xlane.xlu0 %595
        %v597 = vrcp.pop %v596
        %v598 = vmul.f32 %v596, %v597
        %v599 = vsub.f32 1.0, %v598
        %v600 = vmul.f32 %v597, %v599
        %v601 = vadd.f32 %v597, %v600
        %vm602 = vweird.f32 %v596
        %vm603 = vweird.f32 %v597
        %vm604 = vmor %vm602, %vm603
        %v605 = vsel %vm604, %v597, %v601
        %v606 = vand.u32 2147483647, %v596
        %vm607 = vcmp.eq.f32.partialorder %v606, 8.507059e+37
        %v608 = vand.u32 %v596, 2147483648
        %v609 = vor.u32 1.1754944e-38, %v608
        %v610 = vsel %vm607, %v609, %v605
        %v611 = vmul.f32 %v593, %v610
        %v613 = vsel %vm587, %v611, 0
        %615 = vmatpush.msra.mxu0 0.0
        %616 = vmatpush.msra.mxu0 0.0
        %617 = vmatpush.msra.mxu0 0.0
        %618 = vmatpush.msra.mxu0 0.0
        %619 = vmatpush.msra.mxu0 0.0
        %620 = vmatpush.msra.mxu0 0.0
        %621 = vmatpush.msra.mxu0 0.0
        %622 = vmatpush.msra.mxu0 0.0
        %623 = vmatpush.msra.mxu0 0.0
        %624 = vmatpush.msra.mxu0 0.0
        %625 = vmatpush.msra.mxu0 0.0
        %626 = vmatpush.msra.mxu0 0.0
        %627 = vmatpush.msra.mxu0 0.0
        %628 = vmatpush.msra.mxu0 0.0
        %629 = vmatpush.msra.mxu0 0.0
        %v630 = vand.u32 %v387, 4294901760
        %631 = vmatpush.msra.mxu0 %v630
        %v632 = vand.u32 %v613, 4294901760
        %v633 = vsub.f32 %v613, %v632
        %v634 = vand.u32 %v633, 4294901760
        %v635 = vsub.f32 %v633, %v634
        %v636 = vand.u32 %v635, 4294901760
        %637 = vmatmul.f32.gmra.mxu0 %v636
        %v638 = vpop.f32.mrf.mxu0
        %v639 = vadd.f32 0.0, %v638
        %640 = vdwg.mxu0
        %641 = vmatpush.msra.mxu0 0.0
        %642 = vmatpush.msra.mxu0 0.0
        %643 = vmatpush.msra.mxu0 0.0
        %644 = vmatpush.msra.mxu0 0.0
        %645 = vmatpush.msra.mxu0 0.0
        %646 = vmatpush.msra.mxu0 0.0
        %647 = vmatpush.msra.mxu0 0.0
        %648 = vmatpush.msra.mxu0 0.0
        %649 = vmatpush.msra.mxu0 0.0
        %650 = vmatpush.msra.mxu0 0.0
        %651 = vmatpush.msra.mxu0 0.0
        %652 = vmatpush.msra.mxu0 0.0
        %653 = vmatpush.msra.mxu0 0.0
        %654 = vmatpush.msra.mxu0 0.0
        %655 = vmatpush.msra.mxu0 0.0
        %v656 = vand.u32 %v387, 4294901760
        %v657 = vsub.f32 %v387, %v656
        %v658 = vand.u32 %v657, 4294901760
        %v659 = vsub.f32 %v657, %v658
        %v660 = vand.u32 %v659, 4294901760
        %661 = vmatpush.msra.mxu0 %v660
        %v662 = vand.u32 %v613, 4294901760
        %663 = vmatmul.f32.gmra.mxu0 %v662
        %v664 = vpop.f32.mrf.mxu0
        %v665 = vadd.f32 %v639, %v664
        %666 = vdwg.mxu0
        %667 = vmatpush.msra.mxu0 0.0
        %668 = vmatpush.msra.mxu0 0.0
        %669 = vmatpush.msra.mxu0 0.0
        %670 = vmatpush.msra.mxu0 0.0
        %671 = vmatpush.msra.mxu0 0.0
        %672 = vmatpush.msra.mxu0 0.0
        %673 = vmatpush.msra.mxu0 0.0
        %674 = vmatpush.msra.mxu0 0.0
        %675 = vmatpush.msra.mxu0 0.0
        %676 = vmatpush.msra.mxu0 0.0
        %677 = vmatpush.msra.mxu0 0.0
        %678 = vmatpush.msra.mxu0 0.0
        %679 = vmatpush.msra.mxu0 0.0
        %680 = vmatpush.msra.mxu0 0.0
        %681 = vmatpush.msra.mxu0 0.0
        %v682 = vand.u32 %v387, 4294901760
        %v683 = vsub.f32 %v387, %v682
        %684 = vmatpush.msra.mxu0 %v683
        %v685 = vand.u32 %v613, 4294901760
        %v686 = vsub.f32 %v613, %v685
        %687 = vmatmul.f32.gmra.mxu0 %v686
        %v688 = vpop.f32.mrf.mxu0
        %v689 = vadd.f32 %v665, %v688
        %690 = vdwg.mxu0
        %691 = vmatpush.msra.mxu0 0.0
        %692 = vmatpush.msra.mxu0 0.0
        %693 = vmatpush.msra.mxu0 0.0
        %694 = vmatpush.msra.mxu0 0.0
        %695 = vmatpush.msra.mxu0 0.0
        %696 = vmatpush.msra.mxu0 0.0
        %697 = vmatpush.msra.mxu0 0.0
        %698 = vmatpush.msra.mxu0 0.0
        %699 = vmatpush.msra.mxu0 0.0
        %700 = vmatpush.msra.mxu0 0.0
        %701 = vmatpush.msra.mxu0 0.0
        %702 = vmatpush.msra.mxu0 0.0
        %703 = vmatpush.msra.mxu0 0.0
        %704 = vmatpush.msra.mxu0 0.0
        %705 = vmatpush.msra.mxu0 0.0
        %v706 = vand.u32 %v387, 4294901760
        %707 = vmatpush.msra.mxu0 %v706
        %v708 = vand.u32 %v613, 4294901760
        %v709 = vsub.f32 %v613, %v708
        %v710 = vand.u32 %v709, 4294901760
        %711 = vmatmul.f32.gmra.mxu0 %v710
        %v712 = vpop.f32.mrf.mxu0
        %v713 = vadd.f32 %v689, %v712
        %714 = vdwg.mxu0
        %715 = vmatpush.msra.mxu0 0.0
        %716 = vmatpush.msra.mxu0 0.0
        %717 = vmatpush.msra.mxu0 0.0
        %718 = vmatpush.msra.mxu0 0.0
        %719 = vmatpush.msra.mxu0 0.0
        %720 = vmatpush.msra.mxu0 0.0
        %721 = vmatpush.msra.mxu0 0.0
        %722 = vmatpush.msra.mxu0 0.0
        %723 = vmatpush.msra.mxu0 0.0
        %724 = vmatpush.msra.mxu0 0.0
        %725 = vmatpush.msra.mxu0 0.0
        %726 = vmatpush.msra.mxu0 0.0
        %727 = vmatpush.msra.mxu0 0.0
        %728 = vmatpush.msra.mxu0 0.0
        %729 = vmatpush.msra.mxu0 0.0
        %v730 = vand.u32 %v387, 4294901760
        %v731 = vsub.f32 %v387, %v730
        %v732 = vand.u32 %v731, 4294901760
        %733 = vmatpush.msra.mxu0 %v732
        %v734 = vand.u32 %v613, 4294901760
        %735 = vmatmul.f32.gmra.mxu0 %v734
        %v736 = vpop.f32.mrf.mxu0
        %v737 = vadd.f32 %v713, %v736
        %738 = vdwg.mxu0
        %739 = vmatpush.msra.mxu0 0.0
        %740 = vmatpush.msra.mxu0 0.0
        %741 = vmatpush.msra.mxu0 0.0
        %742 = vmatpush.msra.mxu0 0.0
        %743 = vmatpush.msra.mxu0 0.0
        %744 = vmatpush.msra.mxu0 0.0
        %745 = vmatpush.msra.mxu0 0.0
        %746 = vmatpush.msra.mxu0 0.0
        %747 = vmatpush.msra.mxu0 0.0
        %748 = vmatpush.msra.mxu0 0.0
        %749 = vmatpush.msra.mxu0 0.0
        %750 = vmatpush.msra.mxu0 0.0
        %751 = vmatpush.msra.mxu0 0.0
        %752 = vmatpush.msra.mxu0 0.0
        %753 = vmatpush.msra.mxu0 0.0
        %v754 = vand.u32 %v387, 4294901760
        %755 = vmatpush.msra.mxu0 %v754
        %v756 = vand.u32 %v613, 4294901760
        %757 = vmatmul.f32.gmra.mxu0 %v756
        %v758 = vpop.f32.mrf.mxu0
        %v759 = vadd.f32 %v737, %v758
        %760 = vdwg.mxu0
        %vm761 = vcmask 261120
        %762 = vst.msk [vmem:[%s376] sm:$0xff] %vm761, %v759
        %s763 = sand.u32 %s182, 1
        %s764 = scalar_lea.sflag [#allocation4], %s763
        %s765 = sand.u32 %s182, 1
        %s766 = smul.addr %s765, 8
        %s767 = scalar_lea.vmem [#allocation10], %s766
        %s768 = sand.u32 %s210, 1
        %s769 = scalar_lea.sflag [#allocation12], %s768
        %s770 = sand.u32 %s210, 1
        %s771 = smul.addr %s770, 64
        %s772 = scalar_lea.vmem [#allocation11], %s771
        // Predicated region
        $region57: #{tpu_custom_call.1} parent=39 // pred_check
          %p773 = pneg %p192
        $region58: #{tpu_custom_call.1} parent=39 // pred_check_branch
          %775 = sbr.rel (%p773) target = $region60
        $region59: #{tpu_custom_call.1} parent=39 // pred_region
          %777 = vsyncadd %s764, 0
          %s778 = sadd.s32 %s36, %s35
          %s779 = smul.addr %s778, 8
          %s780 = scalar_lea.hbm %s5, %s779
          %s782 = sshll.u32 %s767, 4
          %s783 = int_to_ptr.vmem [resolvable:$true] %s782
          %s784 = sshll.u32 %s780, 4
          %s785 = int_to_ptr.hbm [resolvable:$true] %s784
          %787 = dma.vmem_to_hbm [thread:$0]  %s783, 128, %s785, %s764
        $region60: #{tpu_custom_call.1} parent=39 // pred_fallthru
          _
        // Predicated region
        $region61: #{tpu_custom_call.1} parent=39 // pred_check
          %p788 = pneg %p220
        $region62: #{tpu_custom_call.1} parent=39 // pred_check_branch
          %790 = sbr.rel (%p788) target = $region64
        $region63: #{tpu_custom_call.1} parent=39 // pred_region
          %s791 = smul.u32 8, %s36
          %793 = vsyncadd %s769, 0
          %s794 = smul.addr %s35, 8
          %s795 = sadd.s32 %s791, %s794
          %s796 = smul.addr %s795, 8
          %s797 = scalar_lea.hbm %s6, %s796
          %s798 = sshll.u32 %s772, 4
          %s799 = int_to_ptr.vmem [resolvable:$true] %s798
          %s800 = sshll.u32 %s797, 4
          %s801 = int_to_ptr.hbm [resolvable:$true] %s800
          %806 = dma.vmem_to_hbm [thread:$0]  %s799, 1024, %s801, %s769, 128, 128, 8
        $region64: #{tpu_custom_call.1} parent=39 // pred_fallthru
          _
      $region40: #{tpu_custom_call.1} parent=5 // pred_fallthru
        _
      %p807 = scmp.le.s32.totalorder 2, %s26
      // Predicated region
      $region65: #{tpu_custom_call.1} parent=5 // pred_check
        %p808 = pneg %p807
      $region66: #{tpu_custom_call.1} parent=5 // pred_check_branch
        %810 = sbr.rel (%p808) target = $region68
      $region67: #{tpu_custom_call.1} parent=5 // pred_region
        %s811 = ssub.s32 %s26, 2
        // Predicated region
        $region69: #{tpu_custom_call.1} parent=67 // pred_check
          %p812 = pneg %p198
        $region70: #{tpu_custom_call.1} parent=67 // pred_check_branch
          %814 = sbr.rel (%p812) target = $region72
        $region71: #{tpu_custom_call.1} parent=67 // pred_region
          %s815 = sand.u32 %s183, 1
          %s816 = scalar_lea.sflag [#allocation4], %s815
          %s817 = sand.u32 %s183, 1
          %s818 = smul.addr %s817, 8
          %s819 = scalar_lea.vmem [#allocation10], %s818
          %821 = dma.done %s816, 128
        $region72: #{tpu_custom_call.1} parent=67 // pred_fallthru
          _
        // Predicated region
        $region73: #{tpu_custom_call.1} parent=67 // pred_check
          %p822 = pneg %p226
        $region74: #{tpu_custom_call.1} parent=67 // pred_check_branch
          %824 = sbr.rel (%p822) target = $region76
        $region75: #{tpu_custom_call.1} parent=67 // pred_region
          %s825 = sand.u32 %s211, 1
          %s826 = scalar_lea.sflag [#allocation12], %s825
          %s827 = sand.u32 %s211, 1
          %s828 = smul.addr %s827, 64
          %s829 = scalar_lea.vmem [#allocation11], %s828
          %831 = dma.done %s826, 1024
        $region76: #{tpu_custom_call.1} parent=67 // pred_fallthru
          _
      $region68: #{tpu_custom_call.1} parent=5 // pred_fallthru
        _
    $region6: #{tpu_custom_call.1} parent=1 // loop_footer
      %s30 = sadd.s32 1, %s26
    $region7: #{tpu_custom_call.1} parent=1 // loop_footer_branch
      %25 = sbr.rel target = $region3
    $region8: #{tpu_custom_call.1} parent=1 // loop_exit
      _
    %832 = vsyncpa [#allocation3], 1
    %s833 = scalar_lea.sflag [#allocation3], 1
    %834 = vsyncpa %s833, 1
    %835 = vsyncpa [#allocation6], 1
    %836 = vsyncpa [#allocation9], 1
    %s837 = scalar_lea.sflag [#allocation9], 1
    %838 = vsyncpa %s837, 1
    %839 = vsyncpa [#allocation4], 1
    %s840 = scalar_lea.sflag [#allocation4], 1
    %841 = vsyncpa %s840, 1
    %842 = vsyncpa [#allocation12], 1
    %s843 = scalar_lea.sflag [#allocation12], 1
    %844 = vsyncpa %s843, 1

</llo_original>
